<compile_context>
chip_gen: v6e
topology: v6e:2x2x1
jax: 0.10.0
libtpu: 0.0.40
codegen_flags: <defaults>
</compile_context>

<pallas_src>
import jax
import jax.numpy as jnp
from jax.experimental import pallas as pl
from jax.experimental.pallas import tpu as pltpu


def _bias_add_kernel(x_ref, b_ref, o_ref):
    # x_ref: (TR, L)  -- TR rows = (n, c) planes, L = H*W lane-dense columns
    # b_ref: (TR, 1)  -- per-row bias (bias[c] for that row)
    # o_ref: (TR, L)
    o_ref[...] = x_ref[...] + b_ref[...]


def _pick_row_tile(rows, cols, itemsize, vmem_budget_bytes=2 << 20):
    """Largest row tile that (a) divides `rows`, (b) keeps one block buffer under
    the budget, (c) is a multiple of 8 unless it is the full row extent."""
    max_rows = max(1, vmem_budget_bytes // max(1, cols * itemsize))
    tr = min(rows, max_rows)
    while tr > 1 and not (rows % tr == 0 and (tr % 8 == 0 or tr == rows)):
        tr -= 1
    return tr


def learnable_bias(x, bias):
    """x: (N, C, H, W); bias: any shape holding C elements (e.g. (1, C, 1, 1))."""
    N, C, H, W = x.shape
    R, L = N * C, H * W
    dtype = x.dtype

    # Flatten spatial dims into the lane axis (lane-dense loads/stores).
    x2 = x.reshape(R, L)
    # Hoisted constant prep: per-row bias column (row r=(n,c) gets bias[c]).
    b2 = jnp.broadcast_to(bias.reshape(1, C).astype(dtype), (N, C)).reshape(R, 1)

    tr = _pick_row_tile(R, L, jnp.dtype(dtype).itemsize)
    grid = (R // tr,)

    out2 = pl.pallas_call(
        _bias_add_kernel,
        out_shape=jax.ShapeDtypeStruct((R, L), dtype),
        grid_spec=pltpu.PrefetchScalarGridSpec(
            num_scalar_prefetch=0,
            grid=grid,
            in_specs=[
                pl.BlockSpec((tr, L), lambda i: (i, 0)),
                pl.BlockSpec((tr, 1), lambda i: (i, 0)),
            ],
            out_specs=pl.BlockSpec((tr, L), lambda i: (i, 0)),
        ),
        compiler_params=pltpu.CompilerParams(
            dimension_semantics=("parallel",),
        ),
    )(x2, b2)

    return out2.reshape(N, C, H, W)


def reference(x, bias):
    """Pure-JAX reference mirroring the PyTorch forward."""
    return x + bias.reshape(1, -1, 1, 1).astype(x.dtype)


if __name__ == "__main__":
    # Small shapes consistent with the module: NCHW input, per-channel bias.
    N, C, H, W = 2, 4, 16, 16

    key = jax.random.PRNGKey(0)
    kx, kb = jax.random.split(key)
    x = jax.random.normal(kx, (N, C, H, W), jnp.float32)
    # nn.Parameter default init is zeros; use a nonzero bias as well so the
    # broadcast path is actually exercised.
    bias = jax.random.normal(kb, (1, C, 1, 1), jnp.float32)

    out = jax.block_until_ready(learnable_bias(x, bias))
    ref = jax.block_until_ready(reference(x, bias))
    assert out.shape == x.shape, out.shape
    assert bool(jnp.allclose(out, ref, atol=1e-6)), "kernel output != reference"

    # Spec's default init (zero bias) must be an identity add.
    zero_bias = jnp.zeros((1, C, 1, 1), jnp.float32)
    out_zero = jax.block_until_ready(learnable_bias(x, zero_bias))
    assert bool(jnp.allclose(out_zero, x, atol=0.0)), "zero-bias path mismatch"

    print("KERNEL_OK")
</pallas_src>

<mosaic_0001>
module attributes {stable_mosaic.version = 11 : i64} {
  func.func @_bias_add_kernel(%arg0: i32, %arg1: memref<8x256xf32, #tpu.memory_space<vmem>>, %arg2: memref<8x1xf32, #tpu.memory_space<vmem>>, %arg3: memref<8x256xf32, #tpu.memory_space<vmem>>) attributes {dimension_semantics = [#tpu.dimension_semantics<parallel>], iteration_bounds = array<i64: 1>, scalar_prefetch = 0 : i64, scratch_operands = 0 : i64, tpu.core_type = #tpu.core_type<tc>, window_params = [{transform_indices = @transform_0, window_bounds = array<i64: 8, 256>}, {transform_indices = @transform_1, window_bounds = array<i64: 8, 1>}, {transform_indices = @transform_2, window_bounds = array<i64: 8, 256>}]} {
    %c0 = arith.constant 0 : index
    %c0_0 = arith.constant 0 : index
    %0 = vector.load %arg1[%c0, %c0_0] : memref<8x256xf32, #tpu.memory_space<vmem>>, vector<8x256xf32>
    %c0_1 = arith.constant 0 : index
    %c0_2 = arith.constant 0 : index
    %1 = vector.load %arg2[%c0_1, %c0_2] : memref<8x1xf32, #tpu.memory_space<vmem>>, vector<8x1xf32>
    %2 = vector.broadcast %1 : vector<8x1xf32> to vector<8x256xf32>
    %3 = arith.addf %0, %2 : vector<8x256xf32>
    %c0_3 = arith.constant 0 : index
    %c0_4 = arith.constant 0 : index
    %4 = vector.load %arg3[%c0_3, %c0_4] : memref<8x256xf32, #tpu.memory_space<vmem>>, vector<8x256xf32>
    tpu.vector_store %arg3[%c0_3, %c0_4], %3 {strides = array<i32>} : memref<8x256xf32, #tpu.memory_space<vmem>>, vector<8x256xf32>,
    return
  }
  func.func @transform_0(%arg0: i32) -> (i32, i32) {
    %c0_i32 = arith.constant 0 : i32
    %c0_i32_0 = arith.constant 0 : i32
    return %arg0, %c0_i32 : i32, i32
  }
  func.func @transform_1(%arg0: i32) -> (i32, i32) {
    %c0_i32 = arith.constant 0 : i32
    %c0_i32_0 = arith.constant 0 : i32
    return %arg0, %c0_i32 : i32, i32
  }
  func.func @transform_2(%arg0: i32) -> (i32, i32) {
    %c0_i32 = arith.constant 0 : i32
    %c0_i32_0 = arith.constant 0 : i32
    return %arg0, %c0_i32 : i32, i32
  }
}

</mosaic_0001>

<llo_original>
// kernel: tpu_custom_call.1
$region0: #{tpu_custom_call.1}
  #allocation0 [shape = 'u32[]', space=smem, size = 0x4, offset = 0x4, fixed_abs, tag = 'smem constant byte address 0x4 - core index']
  #allocation1 [shape = 'u32[144,128]{1,0:T(1,128)}', space=vmem, size = 0x12000, scoped, tag = 'internal scratch']
  %s0 = inlined_call_operand.hbm [shape: f32[8,256], index: 0, kind: input, shape index: {}]
  %s1 = inlined_call_operand.vmem [shape: f32[8,1], index: 1, kind: input, shape index: {}]
  %s2 = inlined_call_operand.hbm [shape: f32[8,256], index: 2, kind: output, shape index: {}]
  %s3 = sld [smem:[#allocation0]]
  $region22: #{tpu_custom_call.1} parent=0
    _
  %s5 = ssub.s32 1, %s3
  %s6 = scalar_select 0, %s5, %s3
  $region1: #{tpu_custom_call.1} parent=0
    #allocation2 [shape = 'u8[8192]{0}', space=vmem, size = 0x2000, scoped, tag = 'input window, operand 0, single buffered']
    #allocation3 [shape = 's32[1]{0}', space=sflag, size = 0x4, scoped, tag = 'scoped memory for tpu_custom_call.1']
    #allocation4 [shape = 's32[1]{0}', space=sflag, size = 0x4, scoped, tag = 'scoped memory for tpu_custom_call.1']
    #allocation5 [shape = 'u8[8192]{0}', space=vmem, size = 0x2000, scoped, tag = 'output window, operand 0, single buffered']
    %7 = vsyncpa [#allocation3], 0
    %8 = vsyncpa [#allocation4], 0
    // Predicated region
    $region2: #{tpu_custom_call.1} parent=1 // pred_check
      _
    $region3: #{tpu_custom_call.1} parent=1 // pred_check_branch
      %10 = sbr.rel (0) target = $region5
    $region4: #{tpu_custom_call.1} parent=1 // pred_region
      %s12 = ssub.s32 256, 256
      %13 = vsyncadd [#allocation3], %s12
      %s15 = sshll.u32 [#allocation2], 4
      %s16 = int_to_ptr.vmem [resolvable:$true] %s15
      %18 = dma.hbm_to_vmem [thread:$0]  %s0, 256, %s16, [#allocation3]
    $region5: #{tpu_custom_call.1} parent=1 // pred_fallthru
      _
    // Predicated region
    $region6: #{tpu_custom_call.1} parent=1 // pred_check
      _
    $region7: #{tpu_custom_call.1} parent=1 // pred_check_branch
      %20 = sbr.rel (0) target = $region9
    $region8: #{tpu_custom_call.1} parent=1 // pred_region
      _
    $region9: #{tpu_custom_call.1} parent=1 // pred_fallthru
      _
    // Predicated region
    $region10: #{tpu_custom_call.1} parent=1 // pred_check
      _
    $region11: #{tpu_custom_call.1} parent=1 // pred_check_branch
      %22 = sbr.rel (0) target = $region13
    $region12: #{tpu_custom_call.1} parent=1 // pred_region
      %23 = dma.done [#allocation3], 256
    $region13: #{tpu_custom_call.1} parent=1 // pred_fallthru
      _
    %v24 = vld [vmem:[#allocation2] sm:$0xff]
    %v25 = vld [vmem:[#allocation2 + $0x8] sm:$0xff]
    %v26 = vld [vmem:[%s1] sm:$0xff]
    %28 = vset.pattern.permute.xlu0 0
    %29 = vperm.xlu0 %28, %v26
    %v30 = vpop.permute.xlu0 %29
    %v32 = vadd.f32 %v24, %v30
    %v33 = vadd.f32 %v25, %v30
    %34 = vst [vmem:[#allocation5] sm:$0xff] %v32
    %35 = vst [vmem:[#allocation5 + $0x8] sm:$0xff] %v33
    // Predicated region
    $region14: #{tpu_custom_call.1} parent=1 // pred_check
      _
    $region15: #{tpu_custom_call.1} parent=1 // pred_check_branch
      %37 = sbr.rel (0) target = $region17
    $region16: #{tpu_custom_call.1} parent=1 // pred_region
      %s39 = ssub.s32 256, 256
      %40 = vsyncadd [#allocation4], %s39
      %s42 = sshll.u32 [#allocation5], 4
      %s43 = int_to_ptr.vmem [resolvable:$true] %s42
      %45 = dma.vmem_to_hbm [thread:$0]  %s43, 256, %s2, [#allocation4]
    $region17: #{tpu_custom_call.1} parent=1 // pred_fallthru
      _
    // Predicated region
    $region18: #{tpu_custom_call.1} parent=1 // pred_check
      _
    $region19: #{tpu_custom_call.1} parent=1 // pred_check_branch
      %47 = sbr.rel (0) target = $region21
    $region20: #{tpu_custom_call.1} parent=1 // pred_region
      %48 = dma.done [#allocation4], 256
    $region21: #{tpu_custom_call.1} parent=1 // pred_fallthru
      _
    %49 = vsyncpa [#allocation3], 1
    %50 = vsyncpa [#allocation4], 1

</llo_original>
